<compile_context>
chip_gen: v7x
topology: tpu7x:2x2x1
jax: 0.10.0
libtpu: 0.0.40
codegen_flags: <defaults>
</compile_context>

<pallas_src>
import functools

import jax
import jax.numpy as jnp
from jax import lax
from jax.experimental import pallas as pl
from jax.experimental.pallas import tpu as pltpu

_VMEM_LIMIT = 64 * 1024 * 1024


def _round_up(x, m):
    return (x + m - 1) // m * m


# ------------------------------ Pallas kernels ------------------------------ #

def _mm_bias_kernel(x_ref, w_ref, b_ref, o_ref):
    """o = (x @ w) + bias   (x, w bf16; accumulate + epilogue in f32)."""
    acc = jnp.dot(x_ref[...], w_ref[...], preferred_element_type=jnp.float32)
    o_ref[...] = (acc + b_ref[...]).astype(o_ref.dtype)


def _conv3x3_bias_kernel(stride, ho, wph, ph_ref, w_ref, b_ref, o_ref, acc_ref):
    """3x3 conv as 9 shifted static slices of one flattened slab + 9 matmuls.

    ph_ref : (s*s, Lin, Cin)   flattened zero-padded phase slabs (bf16)
    w_ref  : (9, Cin, Cout)    BN-scale-folded taps (bf16), tap index = ky*3+kx
    b_ref  : (1, Cout)         folded BN bias (f32)
    o_ref  : (ho*wph, Cout)    over-wide output (invalid columns sliced outside)
    acc_ref: (ho*wph, Cout)    f32 VMEM accumulator
    """
    s = stride
    length = ho * wph
    for ky in range(3):
        for kx in range(3):
            phase = (ky % s) * s + (kx % s)
            off = (ky // s) * wph + (kx // s)          # static offset
            xt = ph_ref[phase, off:off + length, :]    # shifted read from VMEM
            contrib = jnp.dot(xt, w_ref[ky * 3 + kx],
                              preferred_element_type=jnp.float32)
            if ky == 0 and kx == 0:
                acc_ref[...] = contrib
            else:
                acc_ref[...] += contrib
    o_ref[...] = (acc_ref[...] + b_ref[...]).astype(o_ref.dtype)


# ------------------------------ Pallas wrappers ----------------------------- #

def _pick_tn(cout):
    if cout > 512:
        for tn in (512, 256, 128):
            if cout % tn == 0:
                return tn
    return cout


def conv1x1_bn(x_nhwc, w2d, bias2d, stride):
    """1x1 conv + folded BN.  x:(N,H,W,Cin) f32, w:(Cin,Cout) bf16, bias:(1,Cout) f32."""
    if stride > 1:
        x_nhwc = x_nhwc[:, ::stride, ::stride, :]
    n, ho, wo, cin = x_nhwc.shape
    cout = w2d.shape[1]
    m = n * ho * wo
    tm = 256
    m_pad = _round_up(m, tm)
    x2 = x_nhwc.reshape(m, cin).astype(jnp.bfloat16)
    if m_pad != m:
        x2 = jnp.pad(x2, ((0, m_pad - m), (0, 0)))
    tn = _pick_tn(cout)
    grid = (m_pad // tm, cout // tn)
    out = pl.pallas_call(
        _mm_bias_kernel,
        out_shape=jax.ShapeDtypeStruct((m_pad, cout), jnp.float32),
        grid=grid,
        in_specs=[
            pl.BlockSpec((tm, cin), lambda i, j: (i, 0)),
            pl.BlockSpec((cin, tn), lambda i, j: (0, j)),
            pl.BlockSpec((1, tn), lambda i, j: (0, j)),
        ],
        out_specs=pl.BlockSpec((tm, tn), lambda i, j: (i, j)),
        compiler_params=pltpu.CompilerParams(
            dimension_semantics=("parallel", "parallel"),
            vmem_limit_bytes=_VMEM_LIMIT),
    )(x2, w2d, bias2d)
    return out[:m].reshape(n, ho, wo, cout)


def conv3x3_bn(x_nhwc, w_taps, bias2d, stride):
    """3x3 conv (padding=1) + folded BN.

    x:(N,H,W,Cin) f32, w_taps:(9,Cin,Cout) bf16, bias:(1,Cout) f32.
    """
    n, h, w, cin = x_nhwc.shape
    cout = w_taps.shape[2]
    s = stride
    ho = (h - 1) // s + 1
    wo = (w - 1) // s + 1
    hph = ho + 2 // s
    wph = wo + 2 // s

    # conv zero-padding (single pass), then pad/crop to exactly (s*hph, s*wph)
    # rows/cols so the phase split is an exact reshape.  Extra rows/cols are
    # never read by valid output positions.
    xp = jnp.pad(x_nhwc, ((0, 0), (1, 1), (1, 1), (0, 0)))
    hp, wp = h + 2, w + 2
    th, tw = s * hph, s * wph
    if th > hp:
        xp = jnp.pad(xp, ((0, 0), (0, th - hp), (0, 0), (0, 0)))
    elif th < hp:
        xp = xp[:, :th]
    if tw > wp:
        xp = jnp.pad(xp, ((0, 0), (0, 0), (0, tw - wp), (0, 0)))
    elif tw < wp:
        xp = xp[:, :, :tw]

    # phases[n, py*s+px, i*wph+j, c] = xp[n, s*i+py, s*j+px, c]
    ph = xp.reshape(n, hph, s, wph, s, cin)
    ph = jnp.transpose(ph, (0, 2, 4, 1, 3, 5)).reshape(n, s * s, hph * wph, cin)
    extra = 2 // s                               # tail rows so shifted windows stay in-bounds
    if extra:
        ph = jnp.pad(ph, ((0, 0), (0, 0), (0, extra), (0, 0)))
    ph = ph.astype(jnp.bfloat16)
    lin = hph * wph + extra
    lout = ho * wph                              # over-wide output rows

    kern = functools.partial(_conv3x3_bias_kernel, s, ho, wph)
    out = pl.pallas_call(
        kern,
        out_shape=jax.ShapeDtypeStruct((n, lout, cout), jnp.float32),
        grid=(n,),
        in_specs=[
            pl.BlockSpec((None, s * s, lin, cin), lambda b: (b, 0, 0, 0)),
            pl.BlockSpec((9, cin, cout), lambda b: (0, 0, 0)),
            pl.BlockSpec((1, cout), lambda b: (0, 0)),
        ],
        out_specs=pl.BlockSpec((None, lout, cout), lambda b: (b, 0, 0)),
        scratch_shapes=[pltpu.VMEM((lout, cout), jnp.float32)],
        compiler_params=pltpu.CompilerParams(
            dimension_semantics=("parallel",),
            vmem_limit_bytes=_VMEM_LIMIT),
    )(ph, w_taps, bias2d)
    return out.reshape(n, ho, wph, cout)[:, :, :wo, :]


# ------------------------------- module forward ----------------------------- #

def conv_bn_forward(x_nchw, conv_w, gamma, beta, mean, var, *, stride=1, eps=1e-5):
    """Forward of Conv_BN: BN(conv(x)).  conv_w is PyTorch-layout (Cout,Cin,k,k)."""
    scale = gamma / jnp.sqrt(var + eps)
    bias2d = (beta - mean * scale).reshape(1, -1).astype(jnp.float32)
    k = conv_w.shape[2]
    x = jnp.transpose(x_nchw, (0, 2, 3, 1)).astype(jnp.float32)   # NCHW -> NHWC
    if k == 1:
        w2d = (conv_w[:, :, 0, 0] * scale[:, None]).T.astype(jnp.bfloat16)
        y = conv1x1_bn(x, w2d, bias2d, stride)
    else:  # k == 3
        wf = conv_w * scale[:, None, None, None]
        w_taps = jnp.transpose(wf, (2, 3, 1, 0)).reshape(
            9, conv_w.shape[1], conv_w.shape[0]).astype(jnp.bfloat16)
        y = conv3x3_bn(x, w_taps, bias2d, stride)
    return jnp.transpose(y, (0, 3, 1, 2))                          # NHWC -> NCHW


# ------------------------------ plain-JAX reference ------------------------- #

def reference_conv_bn(x_nchw, conv_w, gamma, beta, mean, var, ksize, stride, eps=1e-5):
    scale = gamma / jnp.sqrt(var + eps)
    bias = beta - mean * scale
    # match the kernel's bf16 rounding of operands so only accumulation order differs
    w_f = (conv_w * scale[:, None, None, None]).astype(jnp.bfloat16).astype(jnp.float32)
    x = x_nchw.astype(jnp.bfloat16).astype(jnp.float32)
    pad = ksize // 2
    y = lax.conv_general_dilated(
        x, w_f, window_strides=(stride, stride),
        padding=[(pad, pad), (pad, pad)],
        dimension_numbers=("NCHW", "OIHW", "NCHW"))
    return y + bias[None, :, None, None]


# ------------------------------------ main ----------------------------------- #

if __name__ == "__main__":
    key = jax.random.PRNGKey(0)
    N, CIN, H, W, COUT = 2, 32, 16, 16, 64
    k_x, k_w1, k_w3, k_g, k_b, k_m, k_v = jax.random.split(key, 7)

    x = jax.random.normal(k_x, (N, CIN, H, W), jnp.float32)
    w1 = 0.1 * jax.random.normal(k_w1, (COUT, CIN, 1, 1), jnp.float32)
    w3 = 0.1 * jax.random.normal(k_w3, (COUT, CIN, 3, 3), jnp.float32)
    gamma = 1.0 + 0.1 * jax.random.normal(k_g, (COUT,), jnp.float32)
    beta = 0.1 * jax.random.normal(k_b, (COUT,), jnp.float32)
    mean = 0.1 * jax.random.normal(k_m, (COUT,), jnp.float32)
    var = 1.0 + 0.1 * jnp.abs(jax.random.normal(k_v, (COUT,), jnp.float32))

    for ksize, w_conv in ((1, w1), (3, w3)):
        for stride in (1, 2):
            fwd = jax.jit(functools.partial(conv_bn_forward, stride=stride))
            out = jax.block_until_ready(fwd(x, w_conv, gamma, beta, mean, var))
            ho = (H + 2 * (ksize // 2) - ksize) // stride + 1
            wo = (W + 2 * (ksize // 2) - ksize) // stride + 1
            assert out.shape == (N, COUT, ho, wo), (ksize, stride, out.shape)
            assert bool(jnp.all(jnp.isfinite(out))), (ksize, stride)
            ref = reference_conv_bn(x, w_conv, gamma, beta, mean, var, ksize, stride)
            err = float(jnp.max(jnp.abs(out - ref)))
            mag = float(jnp.max(jnp.abs(ref)))
            assert err <= 1e-2 * (mag + 1.0), (ksize, stride, err, mag)
    print("KERNEL_OK")
</pallas_src>

<mosaic_0001>
module attributes {stable_mosaic.version = 11 : i64} {
  func.func @_mm_bias_kernel(%arg0: i32, %arg1: i32, %arg2: memref<256x32xbf16, #tpu.memory_space<vmem>>, %arg3: memref<32x64xbf16, #tpu.memory_space<vmem>>, %arg4: memref<1x64xf32, #tpu.memory_space<vmem>>, %arg5: memref<256x64xf32, #tpu.memory_space<vmem>>) attributes {dimension_semantics = [#tpu.dimension_semantics<parallel>, #tpu.dimension_semantics<parallel>], iteration_bounds = array<i64: 2, 1>, scalar_prefetch = 0 : i64, scratch_operands = 0 : i64, tpu.core_type = #tpu.core_type<tc>, window_params = [{transform_indices = @transform_0, window_bounds = array<i64: 256, 32>}, {transform_indices = @transform_1, window_bounds = array<i64: 32, 64>}, {transform_indices = @transform_2, window_bounds = array<i64: 1, 64>}, {transform_indices = @transform_3, window_bounds = array<i64: 256, 64>}]} {
    %c0 = arith.constant 0 : index
    %c0_0 = arith.constant 0 : index
    %0 = vector.load %arg2[%c0, %c0_0] : memref<256x32xbf16, #tpu.memory_space<vmem>>, vector<256x32xbf16>
    %c0_1 = arith.constant 0 : index
    %c0_2 = arith.constant 0 : index
    %1 = vector.load %arg3[%c0_1, %c0_2] : memref<32x64xbf16, #tpu.memory_space<vmem>>, vector<32x64xbf16>
    %cst = arith.constant dense<0.000000e+00> : vector<256x64xf32>
    %2 = tpu.matmul %0, %1, %cst {dimension_numbers = #tpu.dot_dimension_numbers<[1], [0], [0], [1], [0, 0, 1, 1], [], []>} : vector<256x32xbf16>, vector<32x64xbf16>, vector<256x64xf32> -> vector<256x64xf32>
    %c0_3 = arith.constant 0 : index
    %c0_4 = arith.constant 0 : index
    %3 = vector.load %arg4[%c0_3, %c0_4] : memref<1x64xf32, #tpu.memory_space<vmem>>, vector<1x64xf32>
    %4 = vector.broadcast %3 : vector<1x64xf32> to vector<256x64xf32>
    %5 = arith.addf %2, %4 : vector<256x64xf32>
    %c0_5 = arith.constant 0 : index
    %c0_6 = arith.constant 0 : index
    %6 = vector.load %arg5[%c0_5, %c0_6] : memref<256x64xf32, #tpu.memory_space<vmem>>, vector<256x64xf32>
    tpu.vector_store %arg5[%c0_5, %c0_6], %5 {strides = array<i32>} : memref<256x64xf32, #tpu.memory_space<vmem>>, vector<256x64xf32>,
    return
  }
  func.func @transform_0(%arg0: i32, %arg1: i32) -> (i32, i32) {
    %c0_i32 = arith.constant 0 : i32
    %c0_i32_0 = arith.constant 0 : i32
    return %arg0, %c0_i32 : i32, i32
  }
  func.func @transform_1(%arg0: i32, %arg1: i32) -> (i32, i32) {
    %c0_i32 = arith.constant 0 : i32
    %c0_i32_0 = arith.constant 0 : i32
    return %c0_i32, %arg1 : i32, i32
  }
  func.func @transform_2(%arg0: i32, %arg1: i32) -> (i32, i32) {
    %c0_i32 = arith.constant 0 : i32
    %c0_i32_0 = arith.constant 0 : i32
    return %c0_i32, %arg1 : i32, i32
  }
  func.func @transform_3(%arg0: i32, %arg1: i32) -> (i32, i32) {
    %c0_i32 = arith.constant 0 : i32
    return %arg0, %arg1 : i32, i32
  }
}

</mosaic_0001>

<llo_original>
// kernel: conv_bn_forward.1
$region0: #{conv_bn_forward.1}
  #allocation0 [shape = 'u32[]', space=smem, size = 0x4, offset = 0x4, fixed_abs, tag = 'smem constant byte address 0x4 - core index']
  #allocation1 [shape = 'u32[144,128]{1,0:T(1,128)}', space=vmem, size = 0x12000, scoped, tag = 'internal scratch']
  %s0 = inlined_call_operand.hbm [shape: bf16[512,32], index: 0, kind: input, shape index: {}]
  %s1 = inlined_call_operand.hbm [shape: bf16[32,64], index: 1, kind: input, shape index: {}]
  %s2 = inlined_call_operand.hbm [shape: f32[1,64], index: 2, kind: input, shape index: {}]
  %s3 = inlined_call_operand.hbm [shape: f32[512,64], index: 3, kind: output, shape index: {}]
  %s4 = sld [smem:[#allocation0]]
  $region57: #{conv_bn_forward.1} parent=0
    _
  %s6 = ssub.s32 1, %s4
  %s7 = scalar_select 0, %s6, %s4
  $region1: #{conv_bn_forward.1} parent=0
    #allocation2 [shape = 'u8[131072]{0}', space=vmem, size = 0x20000, scoped, tag = 'input window, operand 0']
    #allocation3 [shape = 's32[2]{0}', space=sflag, size = 0x8, scoped, tag = 'scoped memory for conv_bn_forward.1']
    #allocation4 [shape = 's32[2]{0}', space=sflag, size = 0x8, scoped, tag = 'scoped memory for conv_bn_forward.1']
    #allocation5 [shape = 'u8[8192]{0}', space=vmem, size = 0x2000, scoped, tag = 'input window, operand 1, single buffered']
    #allocation6 [shape = 's32[1]{0}', space=sflag, size = 0x4, scoped, tag = 'scoped memory for conv_bn_forward.1']
    #allocation7 [shape = 'u8[512]{0}', space=vmem, size = 0x400, scoped, tag = 'input window, operand 2, single buffered']
    #allocation8 [shape = 'u8[262144]{0}', space=vmem, size = 0x40000, scoped, tag = 'output window, operand 0']
    %8 = vsyncpa [#allocation3], 0
    %s9 = scalar_lea.sflag [#allocation3], 1
    %10 = vsyncpa %s9, 0
    %11 = vsyncpa [#allocation6], 0
    %12 = vsyncpa [#allocation4], 0
    %s13 = scalar_lea.sflag [#allocation4], 1
    %14 = vsyncpa %s13, 0
    loop: start=0, step=1, limit=4
    $region2: #{conv_bn_forward.1} parent=1 // loop_pre_header
      _
    $region3: #{conv_bn_forward.1} parent=1 // loop_header
      %s16 = sphi 0, %s20
      %p17 = scmp.ge.s32.totalorder %s16, 4
      %s23 = sphi 0, %s35
      %s24 = sphi 0, %s31
      %s25 = sphi 0, %s23
      %s26 = sphi 0, %s24
      %s27 = sphi 0, %s25
      %s28 = sphi 0, %s26
      %s38 = sphi 0, %s40
      %s41 = sphi 0, %s38
      %s42 = sphi 0, %s41
      %s58 = sphi 0, %s42
      %s64 = sphi 0, %s66
      %s67 = sphi 0, %s64
      %s68 = sphi 0, %s67
      %s84 = sphi 0, %s68
      %s90 = sphi 0, %s92
      %s93 = sphi 0, %s90
      %s94 = sphi 0, %s93
      %s110 = sphi 0, %s94
      %s118 = sphi 0, %s120
      %s121 = sphi 0, %s118
      %s122 = sphi 0, %s121
      %s138 = sphi 0, %s122
    $region4: #{conv_bn_forward.1} parent=1 // loop_header_branch
      %19 = sbr.rel (%p17) target = $region8
    $region5: #{conv_bn_forward.1} parent=1 // loop_body
      %s21 = ssub.s32 %s16, 1
      %s22 = ssub.s32 %s16, 2
      %s29 = sadd.s32 1, %s24
      %p30 = scmp.ge.s32.totalorder %s29, 1
      %s31 = scalar_select %p30, 0, %s29
      %s32 = sadd.s32 1, %s23
      %s33 = scalar_select %p30, %s32, %s23
      %p34 = scmp.ge.s32.totalorder %s33, 2
      %s35 = scalar_select %p34, 0, %s33
      %s36 = ssub.s32 %s23, %s35
      %p37 = scmp.eq.s32.totalorder %s36, 0
      %s39 = sadd.s32 %s38, 1
      %s40 = scalar_select %p37, %s38, %s39
      %p43 = pneg %p37
      %p44 = scmp.eq.s32.totalorder %s16, 1
      %p45 = por %p43, %p44
      %p46 = scmp.ne.s32.totalorder %s38, %s41
      %p47 = scmp.eq.s32.totalorder %s16, 0
      %p48 = por %p46, %p47
      %p49 = scmp.ne.s32.totalorder %s38, %s41
      %p50 = scmp.eq.s32.totalorder %s21, 1
      %p51 = por %p49, %p50
      %p52 = scmp.ne.s32.totalorder %s41, %s42
      %p53 = scmp.eq.s32.totalorder %s21, 0
      %p54 = por %p52, %p53
      %p55 = scmp.ne.s32.totalorder %s41, %s42
      %p56 = scmp.eq.s32.totalorder %s22, 1
      %p57 = por %p55, %p56
      %p59 = scmp.ne.s32.totalorder %s42, %s58
      %p60 = scmp.eq.s32.totalorder %s22, 0
      %p61 = por %p59, %p60
      %s62 = ssub.s32 %s24, %s31
      %p63 = scmp.eq.s32.totalorder %s62, 0
      %s65 = sadd.s32 %s64, 1
      %s66 = scalar_select %p63, %s64, %s65
      %p69 = pneg %p63
      %p70 = scmp.eq.s32.totalorder %s16, 1
      %p71 = por %p69, %p70
      %p72 = scmp.ne.s32.totalorder %s64, %s67
      %p73 = scmp.eq.s32.totalorder %s16, 0
      %p74 = por %p72, %p73
      %p75 = scmp.ne.s32.totalorder %s64, %s67
      %p76 = scmp.eq.s32.totalorder %s21, 1
      %p77 = por %p75, %p76
      %p78 = scmp.ne.s32.totalorder %s67, %s68
      %p79 = scmp.eq.s32.totalorder %s21, 0
      %p80 = por %p78, %p79
      %p81 = scmp.ne.s32.totalorder %s67, %s68
      %p82 = scmp.eq.s32.totalorder %s22, 1
      %p83 = por %p81, %p82
      %p85 = scmp.ne.s32.totalorder %s68, %s84
      %p86 = scmp.eq.s32.totalorder %s22, 0
      %p87 = por %p85, %p86
      %s88 = ssub.s32 %s24, %s31
      %p89 = scmp.eq.s32.totalorder %s88, 0
      %s91 = sadd.s32 %s90, 1
      %s92 = scalar_select %p89, %s90, %s91
      %p95 = pneg %p89
      %p96 = scmp.eq.s32.totalorder %s16, 1
      %p97 = por %p95, %p96
      %p98 = scmp.ne.s32.totalorder %s90, %s93
      %p99 = scmp.eq.s32.totalorder %s16, 0
      %p100 = por %p98, %p99
      %p101 = scmp.ne.s32.totalorder %s90, %s93
      %p102 = scmp.eq.s32.totalorder %s21, 1
      %p103 = por %p101, %p102
      %p104 = scmp.ne.s32.totalorder %s93, %s94
      %p105 = scmp.eq.s32.totalorder %s21, 0
      %p106 = por %p104, %p105
      %p107 = scmp.ne.s32.totalorder %s93, %s94
      %p108 = scmp.eq.s32.totalorder %s22, 1
      %p109 = por %p107, %p108
      %p111 = scmp.ne.s32.totalorder %s94, %s110
      %p112 = scmp.eq.s32.totalorder %s22, 0
      %p113 = por %p111, %p112
      %s114 = ssub.s32 %s23, %s35
      %s115 = ssub.s32 %s24, %s31
      %s116 = sor.u32 %s114, %s115
      %p117 = scmp.eq.s32.totalorder %s116, 0
      %s119 = sadd.s32 %s118, 1
      %s120 = scalar_select %p117, %s118, %s119
      %p123 = pneg %p117
      %p124 = scmp.eq.s32.totalorder %s16, 1
      %p125 = por %p123, %p124
      %p126 = scmp.ne.s32.totalorder %s118, %s121
      %p127 = scmp.eq.s32.totalorder %s16, 0
      %p128 = por %p126, %p127
      %p129 = scmp.ne.s32.totalorder %s118, %s121
      %p130 = scmp.eq.s32.totalorder %s21, 1
      %p131 = por %p129, %p130
      %p132 = scmp.ne.s32.totalorder %s121, %s122
      %p133 = scmp.eq.s32.totalorder %s21, 0
      %p134 = por %p132, %p133
      %p135 = scmp.ne.s32.totalorder %s121, %s122
      %p136 = scmp.eq.s32.totalorder %s22, 1
      %p137 = por %p135, %p136
      %p139 = scmp.ne.s32.totalorder %s122, %s138
      %p140 = scmp.eq.s32.totalorder %s22, 0
      %p141 = por %p139, %p140
      %p142 = scmp.le.s32.totalorder 1, %s16
      %p143 = scmp.lt.s32.totalorder %s16, 3
      %p144 = pnand %p142, %p143
      %p145 = pneg %p144
      // Predicated region
      $region9: #{conv_bn_forward.1} parent=5 // pred_check
        _
      $region10: #{conv_bn_forward.1} parent=5 // pred_check_branch
        %147 = sbr.rel (%p144) target = $region12
      $region11: #{conv_bn_forward.1} parent=5 // pred_region
        %s148 = ssub.s32 %s16, 1
        // Predicated region
        $region13: #{conv_bn_forward.1} parent=11 // pred_check
          %p149 = pneg %p80
        $region14: #{conv_bn_forward.1} parent=11 // pred_check_branch
          %151 = sbr.rel (%p149) target = $region16
        $region15: #{conv_bn_forward.1} parent=11 // pred_region
          %s153 = ssub.s32 256, 256
          %154 = vsyncadd [#allocation6], %s153
          %s155 = smul.addr %s26, 64
          %s156 = scalar_lea.hbm %s1, %s155
          %s157 = sshll.u32 [#allocation5], 4
          %s158 = int_to_ptr.vmem [resolvable:$true] %s157
          %163 = dma.hbm_to_vmem [thread:$0]  %s156, 256, %s158, [#allocation6], 64, 64, 4
        $region16: #{conv_bn_forward.1} parent=11 // pred_fallthru
          _
        // Predicated region
        $region17: #{conv_bn_forward.1} parent=11 // pred_check
          %p164 = pneg %p106
        $region18: #{conv_bn_forward.1} parent=11 // pred_check_branch
          %166 = sbr.rel (%p164) target = $region20
        $region19: #{conv_bn_forward.1} parent=11 // pred_region
          %s168 = ssub.s32 16, 16
          %169 = vsyncadd [#allocation6], %s168
          %s170 = smul.addr %s26, 16
          %s171 = scalar_lea.hbm %s2, %s170
          %s173 = sshll.u32 [#allocation7], 4
          %s174 = int_to_ptr.vmem [resolvable:$true] %s173
          %176 = dma.hbm_to_vmem [thread:$0]  %s171, 16, %s174, [#allocation6]
        $region20: #{conv_bn_forward.1} parent=11 // pred_fallthru
          _
      $region12: #{conv_bn_forward.1} parent=5 // pred_fallthru
        _
      %p177 = scmp.lt.s32.totalorder %s16, 2
      // Predicated region
      $region21: #{conv_bn_forward.1} parent=5 // pred_check
        %p178 = pneg %p177
      $region22: #{conv_bn_forward.1} parent=5 // pred_check_branch
        %180 = sbr.rel (%p178) target = $region24
      $region23: #{conv_bn_forward.1} parent=5 // pred_region
        // Predicated region
        $region25: #{conv_bn_forward.1} parent=23 // pred_check
          %p181 = pneg %p48
        $region26: #{conv_bn_forward.1} parent=23 // pred_check_branch
          %183 = sbr.rel (%p181) target = $region28
        $region27: #{conv_bn_forward.1} parent=23 // pred_region
          %s184 = sand.u32 %s38, 1
          %s185 = scalar_lea.sflag [#allocation3], %s184
          %s186 = sand.u32 %s38, 1
          %s187 = smul.addr %s186, 128
          %s188 = scalar_lea.vmem [#allocation2], %s187
          %s189 = smul.u32 32, %s23
          %s191 = ssub.s32 2048, 2048
          %192 = vsyncadd %s185, %s191
          %s193 = smul.addr %s189, 64
          %s194 = scalar_lea.hbm %s0, %s193
          %s195 = sshll.u32 %s188, 4
          %s196 = int_to_ptr.vmem [resolvable:$true] %s195
          %201 = dma.hbm_to_vmem [thread:$0]  %s194, 2048, %s196, %s185, 64, 64, 4
        $region28: #{conv_bn_forward.1} parent=23 // pred_fallthru
          _
      $region24: #{conv_bn_forward.1} parent=5 // pred_fallthru
        _
      %p202 = scmp.le.s32.totalorder 1, %s16
      %p203 = scmp.lt.s32.totalorder %s16, 3
      %p204 = pnand %p202, %p203
      %p205 = pneg %p204
      // Predicated region
      $region29: #{conv_bn_forward.1} parent=5 // pred_check
        _
      $region30: #{conv_bn_forward.1} parent=5 // pred_check_branch
        %207 = sbr.rel (%p204) target = $region32
      $region31: #{conv_bn_forward.1} parent=5 // pred_region
        %s208 = ssub.s32 %s16, 1
        %s209 = sand.u32 %s41, 1
        %s210 = scalar_lea.sflag [#allocation3], %s209
        %s211 = sand.u32 %s41, 1
        %s212 = smul.addr %s211, 128
        %s213 = scalar_lea.vmem [#allocation2], %s212
        // Predicated region
        $region33: #{conv_bn_forward.1} parent=31 // pred_check
          %p214 = pneg %p54
        $region34: #{conv_bn_forward.1} parent=31 // pred_check_branch
          %216 = sbr.rel (%p214) target = $region36
        $region35: #{conv_bn_forward.1} parent=31 // pred_region
          %217 = dma.done %s210, 2048
        $region36: #{conv_bn_forward.1} parent=31 // pred_fallthru
          _
        // Predicated region
        $region37: #{conv_bn_forward.1} parent=31 // pred_check
          %p218 = pneg %p80
        $region38: #{conv_bn_forward.1} parent=31 // pred_check_branch
          %220 = sbr.rel (%p218) target = $region40
        $region39: #{conv_bn_forward.1} parent=31 // pred_region
          %221 = dma.done [#allocation6], 256
        $region40: #{conv_bn_forward.1} parent=31 // pred_fallthru
          _
        // Predicated region
        $region41: #{conv_bn_forward.1} parent=31 // pred_check
          %p222 = pneg %p106
        $region42: #{conv_bn_forward.1} parent=31 // pred_check_branch
          %224 = sbr.rel (%p222) target = $region44
        $region43: #{conv_bn_forward.1} parent=31 // pred_region
          %225 = dma.done [#allocation6], 16
        $region44: #{conv_bn_forward.1} parent=31 // pred_fallthru
          _
        %s226 = sand.u32 %s41, 1
        %s227 = scalar_lea.sflag [#allocation3], %s226
        %s228 = sand.u32 %s41, 1
        %s229 = smul.addr %s228, 128
        %s230 = scalar_lea.vmem [#allocation2], %s229
        %p231 = pneg %p54
        %p232 = pneg %p51
        %p233 = pneg %p80
        %p234 = pneg %p77
        %p235 = pneg %p106
        %p236 = pneg %p103
        %p237 = pneg %p134
        %p238 = pneg %p131
        %s239 = sand.u32 %s121, 1
        %s240 = scalar_lea.sflag [#allocation4], %s239
        %s241 = sand.u32 %s121, 1
        %s242 = smul.addr %s241, 256
        %s243 = scalar_lea.vmem [#allocation8], %s242
        %s244 = smul.u32 32, %s25
        %s245 = smul.u32 32, %s25
        %v247 = vld [vmem:[%s213] sm:$0xf]
        %v248 = vld [vmem:[%s213 + $0x4] sm:$0xf]
        %v249 = vld [vmem:[%s213 + $0x8] sm:$0xf]
        %v250 = vld [vmem:[%s213 + $0xc] sm:$0xf]
        %v251 = vld [vmem:[%s213 + $0x10] sm:$0xf]
        %v252 = vld [vmem:[%s213 + $0x14] sm:$0xf]
        %v253 = vld [vmem:[%s213 + $0x18] sm:$0xf]
        %v254 = vld [vmem:[%s213 + $0x1c] sm:$0xf]
        %v255 = vld [vmem:[%s213 + $0x20] sm:$0xf]
        %v256 = vld [vmem:[%s213 + $0x24] sm:$0xf]
        %v257 = vld [vmem:[%s213 + $0x28] sm:$0xf]
        %v258 = vld [vmem:[%s213 + $0x2c] sm:$0xf]
        %v259 = vld [vmem:[%s213 + $0x30] sm:$0xf]
        %v260 = vld [vmem:[%s213 + $0x34] sm:$0xf]
        %v261 = vld [vmem:[%s213 + $0x38] sm:$0xf]
        %v262 = vld [vmem:[%s213 + $0x3c] sm:$0xf]
        %v263 = vld [vmem:[%s213 + $0x40] sm:$0xf]
        %v264 = vld [vmem:[%s213 + $0x44] sm:$0xf]
        %v265 = vld [vmem:[%s213 + $0x48] sm:$0xf]
        %v266 = vld [vmem:[%s213 + $0x4c] sm:$0xf]
        %v267 = vld [vmem:[%s213 + $0x50] sm:$0xf]
        %v268 = vld [vmem:[%s213 + $0x54] sm:$0xf]
        %v269 = vld [vmem:[%s213 + $0x58] sm:$0xf]
        %v270 = vld [vmem:[%s213 + $0x5c] sm:$0xf]
        %v271 = vld [vmem:[%s213 + $0x60] sm:$0xf]
        %v272 = vld [vmem:[%s213 + $0x64] sm:$0xf]
        %v273 = vld [vmem:[%s213 + $0x68] sm:$0xf]
        %v274 = vld [vmem:[%s213 + $0x6c] sm:$0xf]
        %v275 = vld [vmem:[%s213 + $0x70] sm:$0xf]
        %v276 = vld [vmem:[%s213 + $0x74] sm:$0xf]
        %v277 = vld [vmem:[%s213 + $0x78] sm:$0xf]
        %v278 = vld [vmem:[%s213 + $0x7c] sm:$0xf]
        %v279 = vld [vmem:[#allocation5] sm:$0xf]
        %v280 = vld [vmem:[#allocation5 + $0x4] sm:$0xf]
        %v281 = vld [vmem:[#allocation5 + $0x8] sm:$0xf]
        %v282 = vld [vmem:[#allocation5 + $0xc] sm:$0xf]
        %v283 = vld [vmem:[#allocation7] sm:$0x1]
        %v285 = vlaneseq
        %v286 = vshrl.u32 %v285, 7
        %v287 = vsub.s32 0, %v286
        %v288 = vrot.slane %v283, %v287
        %v322 = vunpack.c.l.b16 %v247
        %v323 = vunpack.c.l.b16 %v248
        %v324 = vunpack.c.l.b16 %v249
        %v325 = vunpack.c.l.b16 %v250
        %v326 = vunpack.c.l.b16 %v251
        %v327 = vunpack.c.l.b16 %v252
        %v328 = vunpack.c.l.b16 %v253
        %v329 = vunpack.c.l.b16 %v254
        %v330 = vunpack.c.l.b16 %v255
        %v331 = vunpack.c.l.b16 %v256
        %v332 = vunpack.c.l.b16 %v257
        %v333 = vunpack.c.l.b16 %v258
        %v334 = vunpack.c.l.b16 %v259
        %v335 = vunpack.c.l.b16 %v260
        %v336 = vunpack.c.l.b16 %v261
        %v337 = vunpack.c.l.b16 %v262
        %v338 = vunpack.c.l.b16 %v263
        %v339 = vunpack.c.l.b16 %v264
        %v340 = vunpack.c.l.b16 %v265
        %v341 = vunpack.c.l.b16 %v266
        %v342 = vunpack.c.l.b16 %v267
        %v343 = vunpack.c.l.b16 %v268
        %v344 = vunpack.c.l.b16 %v269
        %v345 = vunpack.c.l.b16 %v270
        %v346 = vunpack.c.l.b16 %v271
        %v347 = vunpack.c.l.b16 %v272
        %v348 = vunpack.c.l.b16 %v273
        %v349 = vunpack.c.l.b16 %v274
        %v350 = vunpack.c.l.b16 %v275
        %v351 = vunpack.c.l.b16 %v276
        %v352 = vunpack.c.l.b16 %v277
        %v353 = vunpack.c.l.b16 %v278
        %v354 = vpack.c.b16 %v323, %v322
        %v355 = vpack.c.b16 %v325, %v324
        %v356 = vpack.c.b16 %v327, %v326
        %v357 = vpack.c.b16 %v329, %v328
        %v358 = vpack.c.b16 %v331, %v330
        %v359 = vpack.c.b16 %v333, %v332
        %v360 = vpack.c.b16 %v335, %v334
        %v361 = vpack.c.b16 %v337, %v336
        %v362 = vpack.c.b16 %v339, %v338
        %v363 = vpack.c.b16 %v341, %v340
        %v364 = vpack.c.b16 %v343, %v342
        %v365 = vpack.c.b16 %v345, %v344
        %v366 = vpack.c.b16 %v347, %v346
        %v367 = vpack.c.b16 %v349, %v348
        %v368 = vpack.c.b16 %v351, %v350
        %v369 = vpack.c.b16 %v353, %v352
        %v374 = vunpack.c.l.b16 %v279
        %v375 = vunpack.c.l.b16 %v280
        %v376 = vunpack.c.l.b16 %v281
        %v377 = vunpack.c.l.b16 %v282
        %v378 = vpack.c.b16 %v375, %v374
        %v379 = vpack.c.b16 %v377, %v376
        %vm382 = vcmask 261120
        %v384 = vsel %vm382, %v354, 0
        %v387 = vsel %vm382, %v355, 0
        %v390 = vsel %vm382, %v356, 0
        %v393 = vsel %vm382, %v357, 0
        %v396 = vsel %vm382, %v358, 0
        %v399 = vsel %vm382, %v359, 0
        %v402 = vsel %vm382, %v360, 0
        %v405 = vsel %vm382, %v361, 0
        %v408 = vsel %vm382, %v362, 0
        %v411 = vsel %vm382, %v363, 0
        %v414 = vsel %vm382, %v364, 0
        %v417 = vsel %vm382, %v365, 0
        %v420 = vsel %vm382, %v366, 0
        %v423 = vsel %vm382, %v367, 0
        %v426 = vsel %vm382, %v368, 0
        %v429 = vsel %vm382, %v369, 0
        %431 = vmatprep.subr.bf16.mxu0 0
        %432 = vmatpush1.bf16.msra.mxu0 %v378
        %433 = vmatprep.subr.bf16.mxu0 0
        %434 = vmatpush1.bf16.msra.mxu0 %v379
        %435 = vmatprep.subr.bf16.mxu0 0
        %436 = vmatpush1.bf16.msra.mxu0 0
        %437 = vmatprep.subr.bf16.mxu0 0
        %438 = vmatpush1.bf16.msra.mxu0 0
        %439 = vmatprep.subr.bf16.mxu0 0
        %440 = vmatpush1.bf16.msra.mxu0 0
        %441 = vmatprep.subr.bf16.mxu0 0
        %442 = vmatpush1.bf16.msra.mxu0 0
        %443 = vmatprep.subr.bf16.mxu0 0
        %444 = vmatpush1.bf16.msra.mxu0 0
        %445 = vmatprep.subr.bf16.mxu0 0
        %446 = vmatpush1.bf16.msra.mxu0 0
        %447 = vmatprep.subr.bf16.mxu0 0
        %448 = vmatpush1.bf16.msra.mxu0 0
        %449 = vmatprep.subr.bf16.mxu0 0
        %450 = vmatpush1.bf16.msra.mxu0 0
        %451 = vmatprep.subr.bf16.mxu0 0
        %452 = vmatpush1.bf16.msra.mxu0 0
        %453 = vmatprep.subr.bf16.mxu0 0
        %454 = vmatpush1.bf16.msra.mxu0 0
        %455 = vmatprep.subr.bf16.mxu0 0
        %456 = vmatpush1.bf16.msra.mxu0 0
        %457 = vmatprep.subr.bf16.mxu0 0
        %458 = vmatpush1.bf16.msra.mxu0 0
        %459 = vmatprep.subr.bf16.mxu0 0
        %460 = vmatpush1.bf16.msra.mxu0 0
        %461 = vmatprep.subr.bf16.mxu0 0
        %462 = vmatpush1.bf16.msra.mxu0 0
        %463 = vmatprep.mubr.bf16.mxu0 0
        %464 = vmatmul.mubr.bf16.gmra.mrb[0].mxu0 %v384
        %v465 = vpop.f32.mrb[0].mxu0
        %v466 = vadd.f32 %v288, %v465
        %v467 = vpop.f32.mrb[0].mxu0
        %v468 = vpop.f32.mrb[0].mxu0
        %v469 = vadd.f32 %v288, %v468
        %v470 = vpop.f32.mrb[0].mxu0
        %471 = vmatprep.mubr.bf16.mxu0 0
        %472 = vmatmul.mubr.bf16.gmra.mrb[0].mxu0 %v387
        %v473 = vpop.f32.mrb[0].mxu0
        %v474 = vadd.f32 %v288, %v473
        %v475 = vpop.f32.mrb[0].mxu0
        %v476 = vpop.f32.mrb[0].mxu0
        %v477 = vadd.f32 %v288, %v476
        %v478 = vpop.f32.mrb[0].mxu0
        %479 = vmatprep.mubr.bf16.mxu0 0
        %480 = vmatmul.mubr.bf16.gmra.mrb[0].mxu0 %v390
        %v481 = vpop.f32.mrb[0].mxu0
        %v482 = vadd.f32 %v288, %v481
        %v483 = vpop.f32.mrb[0].mxu0
        %v484 = vpop.f32.mrb[0].mxu0
        %v485 = vadd.f32 %v288, %v484
        %v486 = vpop.f32.mrb[0].mxu0
        %487 = vmatprep.mubr.bf16.mxu0 0
        %488 = vmatmul.mubr.bf16.gmra.mrb[0].mxu0 %v393
        %v489 = vpop.f32.mrb[0].mxu0
        %v490 = vadd.f32 %v288, %v489
        %v491 = vpop.f32.mrb[0].mxu0
        %v492 = vpop.f32.mrb[0].mxu0
        %v493 = vadd.f32 %v288, %v492
        %v494 = vpop.f32.mrb[0].mxu0
        %495 = vmatprep.mubr.bf16.mxu0 0
        %496 = vmatmul.mubr.bf16.gmra.mrb[0].mxu0 %v396
        %v497 = vpop.f32.mrb[0].mxu0
        %v498 = vadd.f32 %v288, %v497
        %v499 = vpop.f32.mrb[0].mxu0
        %v500 = vpop.f32.mrb[0].mxu0
        %v501 = vadd.f32 %v288, %v500
        %v502 = vpop.f32.mrb[0].mxu0
        %503 = vmatprep.mubr.bf16.mxu0 0
        %504 = vmatmul.mubr.bf16.gmra.mrb[0].mxu0 %v399
        %v505 = vpop.f32.mrb[0].mxu0
        %v506 = vadd.f32 %v288, %v505
        %v507 = vpop.f32.mrb[0].mxu0
        %v508 = vpop.f32.mrb[0].mxu0
        %v509 = vadd.f32 %v288, %v508
        %v510 = vpop.f32.mrb[0].mxu0
        %511 = vmatprep.mubr.bf16.mxu0 0
        %512 = vmatmul.mubr.bf16.gmra.mrb[0].mxu0 %v402
        %v513 = vpop.f32.mrb[0].mxu0
        %v514 = vadd.f32 %v288, %v513
        %v515 = vpop.f32.mrb[0].mxu0
        %v516 = vpop.f32.mrb[0].mxu0
        %v517 = vadd.f32 %v288, %v516
        %v518 = vpop.f32.mrb[0].mxu0
        %519 = vmatprep.mubr.bf16.mxu0 0
        %520 = vmatmul.mubr.bf16.gmra.mrb[0].mxu0 %v405
        %v521 = vpop.f32.mrb[0].mxu0
        %v522 = vadd.f32 %v288, %v521
        %v523 = vpop.f32.mrb[0].mxu0
        %v524 = vpop.f32.mrb[0].mxu0
        %v525 = vadd.f32 %v288, %v524
        %v526 = vpop.f32.mrb[0].mxu0
        %527 = vmatprep.mubr.bf16.mxu0 0
        %528 = vmatmul.mubr.bf16.gmra.mrb[0].mxu0 %v408
        %v529 = vpop.f32.mrb[0].mxu0
        %v530 = vadd.f32 %v288, %v529
        %v531 = vpop.f32.mrb[0].mxu0
        %v532 = vpop.f32.mrb[0].mxu0
        %v533 = vadd.f32 %v288, %v532
        %v534 = vpop.f32.mrb[0].mxu0
        %535 = vmatprep.mubr.bf16.mxu0 0
        %536 = vmatmul.mubr.bf16.gmra.mrb[0].mxu0 %v411
        %v537 = vpop.f32.mrb[0].mxu0
        %v538 = vadd.f32 %v288, %v537
        %v539 = vpop.f32.mrb[0].mxu0
        %v540 = vpop.f32.mrb[0].mxu0
        %v541 = vadd.f32 %v288, %v540
        %v542 = vpop.f32.mrb[0].mxu0
        %543 = vmatprep.mubr.bf16.mxu0 0
        %544 = vmatmul.mubr.bf16.gmra.mrb[0].mxu0 %v414
        %v545 = vpop.f32.mrb[0].mxu0
        %v546 = vadd.f32 %v288, %v545
        %v547 = vpop.f32.mrb[0].mxu0
        %v548 = vpop.f32.mrb[0].mxu0
        %v549 = vadd.f32 %v288, %v548
        %v550 = vpop.f32.mrb[0].mxu0
        %551 = vmatprep.mubr.bf16.mxu0 0
        %552 = vmatmul.mubr.bf16.gmra.mrb[0].mxu0 %v417
        %v553 = vpop.f32.mrb[0].mxu0
        %v554 = vadd.f32 %v288, %v553
        %v555 = vpop.f32.mrb[0].mxu0
        %v556 = vpop.f32.mrb[0].mxu0
        %v557 = vadd.f32 %v288, %v556
        %v558 = vpop.f32.mrb[0].mxu0
        %559 = vmatprep.mubr.bf16.mxu0 0
        %560 = vmatmul.mubr.bf16.gmra.mrb[0].mxu0 %v420
        %v561 = vpop.f32.mrb[0].mxu0
        %v562 = vadd.f32 %v288, %v561
        %v563 = vpop.f32.mrb[0].mxu0
        %v564 = vpop.f32.mrb[0].mxu0
        %v565 = vadd.f32 %v288, %v564
        %v566 = vpop.f32.mrb[0].mxu0
        %567 = vmatprep.mubr.bf16.mxu0 0
        %568 = vmatmul.mubr.bf16.gmra.mrb[0].mxu0 %v423
        %v569 = vpop.f32.mrb[0].mxu0
        %v570 = vadd.f32 %v288, %v569
        %v571 = vpop.f32.mrb[0].mxu0
        %v572 = vpop.f32.mrb[0].mxu0
        %v573 = vadd.f32 %v288, %v572
        %v574 = vpop.f32.mrb[0].mxu0
        %575 = vmatprep.mubr.bf16.mxu0 0
        %576 = vmatmul.mubr.bf16.gmra.mrb[0].mxu0 %v426
        %v577 = vpop.f32.mrb[0].mxu0
        %v578 = vadd.f32 %v288, %v577
        %v579 = vpop.f32.mrb[0].mxu0
        %v580 = vpop.f32.mrb[0].mxu0
        %v581 = vadd.f32 %v288, %v580
        %v582 = vpop.f32.mrb[0].mxu0
        %583 = vmatprep.mubr.bf16.mxu0 0
        %584 = vmatmul.mubr.bf16.gmra.mrb[0].mxu0 %v429
        %v585 = vpop.f32.mrb[0].mxu0
        %v586 = vadd.f32 %v288, %v585
        %v587 = vpop.f32.mrb[0].mxu0
        %v588 = vpop.f32.mrb[0].mxu0
        %v589 = vadd.f32 %v288, %v588
        %v590 = vpop.f32.mrb[0].mxu0
        %591 = vdwg.mxu0
        %vm592 = vcmask 523264
        %593 = vst.msk [vmem:[%s243] sm:$0xff] %vm592, %v466
        %594 = vst.msk [vmem:[%s243 + $0x8] sm:$0xff] %vm592, %v469
        %595 = vst.msk [vmem:[%s243 + $0x10] sm:$0xff] %vm592, %v474
        %596 = vst.msk [vmem:[%s243 + $0x18] sm:$0xff] %vm592, %v477
        %597 = vst.msk [vmem:[%s243 + $0x20] sm:$0xff] %vm592, %v482
        %598 = vst.msk [vmem:[%s243 + $0x28] sm:$0xff] %vm592, %v485
        %599 = vst.msk [vmem:[%s243 + $0x30] sm:$0xff] %vm592, %v490
        %600 = vst.msk [vmem:[%s243 + $0x38] sm:$0xff] %vm592, %v493
        %601 = vst.msk [vmem:[%s243 + $0x40] sm:$0xff] %vm592, %v498
        %602 = vst.msk [vmem:[%s243 + $0x48] sm:$0xff] %vm592, %v501
        %603 = vst.msk [vmem:[%s243 + $0x50] sm:$0xff] %vm592, %v506
        %604 = vst.msk [vmem:[%s243 + $0x58] sm:$0xff] %vm592, %v509
        %605 = vst.msk [vmem:[%s243 + $0x60] sm:$0xff] %vm592, %v514
        %606 = vst.msk [vmem:[%s243 + $0x68] sm:$0xff] %vm592, %v517
        %607 = vst.msk [vmem:[%s243 + $0x70] sm:$0xff] %vm592, %v522
        %608 = vst.msk [vmem:[%s243 + $0x78] sm:$0xff] %vm592, %v525
        %609 = vst.msk [vmem:[%s243 + $0x80] sm:$0xff] %vm592, %v530
        %610 = vst.msk [vmem:[%s243 + $0x88] sm:$0xff] %vm592, %v533
        %611 = vst.msk [vmem:[%s243 + $0x90] sm:$0xff] %vm592, %v538
        %612 = vst.msk [vmem:[%s243 + $0x98] sm:$0xff] %vm592, %v541
        %613 = vst.msk [vmem:[%s243 + $0xa0] sm:$0xff] %vm592, %v546
        %614 = vst.msk [vmem:[%s243 + $0xa8] sm:$0xff] %vm592, %v549
        %615 = vst.msk [vmem:[%s243 + $0xb0] sm:$0xff] %vm592, %v554
        %616 = vst.msk [vmem:[%s243 + $0xb8] sm:$0xff] %vm592, %v557
        %617 = vst.msk [vmem:[%s243 + $0xc0] sm:$0xff] %vm592, %v562
        %618 = vst.msk [vmem:[%s243 + $0xc8] sm:$0xff] %vm592, %v565
        %619 = vst.msk [vmem:[%s243 + $0xd0] sm:$0xff] %vm592, %v570
        %620 = vst.msk [vmem:[%s243 + $0xd8] sm:$0xff] %vm592, %v573
        %621 = vst.msk [vmem:[%s243 + $0xe0] sm:$0xff] %vm592, %v578
        %622 = vst.msk [vmem:[%s243 + $0xe8] sm:$0xff] %vm592, %v581
        %623 = vst.msk [vmem:[%s243 + $0xf0] sm:$0xff] %vm592, %v586
        %624 = vst.msk [vmem:[%s243 + $0xf8] sm:$0xff] %vm592, %v589
        %s625 = sand.u32 %s121, 1
        %s626 = scalar_lea.sflag [#allocation4], %s625
        %s627 = sand.u32 %s121, 1
        %s628 = smul.addr %s627, 256
        %s629 = scalar_lea.vmem [#allocation8], %s628
        // Predicated region
        $region45: #{conv_bn_forward.1} parent=31 // pred_check
          %p630 = pneg %p131
        $region46: #{conv_bn_forward.1} parent=31 // pred_check_branch
          %632 = sbr.rel (%p630) target = $region48
        $region47: #{conv_bn_forward.1} parent=31 // pred_region
          %s633 = smul.u32 32, %s25
          %s635 = ssub.s32 4096, 4096
          %636 = vsyncadd %s626, %s635
          %s637 = sadd.s32 %s26, %s633
          %s638 = smul.addr %s637, 128
          %s639 = scalar_lea.hbm %s3, %s638
          %s640 = sshll.u32 %s629, 4
          %s641 = int_to_ptr.vmem [resolvable:$true] %s640
          %646 = dma.vmem_to_hbm [thread:$0]  %s641, 4096, %s639, %s626, 128, 128, 8
        $region48: #{conv_bn_forward.1} parent=31 // pred_fallthru
          _
      $region32: #{conv_bn_forward.1} parent=5 // pred_fallthru
        _
      %p647 = scmp.le.s32.totalorder 2, %s16
      // Predicated region
      $region49: #{conv_bn_forward.1} parent=5 // pred_check
        %p648 = pneg %p647
      $region50: #{conv_bn_forward.1} parent=5 // pred_check_branch
        %650 = sbr.rel (%p648) target = $region52
      $region51: #{conv_bn_forward.1} parent=5 // pred_region
        %s651 = ssub.s32 %s16, 2
        // Predicated region
        $region53: #{conv_bn_forward.1} parent=51 // pred_check
          %p652 = pneg %p137
        $region54: #{conv_bn_forward.1} parent=51 // pred_check_branch
          %654 = sbr.rel (%p652) target = $region56
        $region55: #{conv_bn_forward.1} parent=51 // pred_region
          %s655 = sand.u32 %s122, 1
          %s656 = scalar_lea.sflag [#allocation4], %s655
          %s657 = sand.u32 %s122, 1
          %s658 = smul.addr %s657, 256
          %s659 = scalar_lea.vmem [#allocation8], %s658
          %660 = dma.done %s656, 4096
        $region56: #{conv_bn_forward.1} parent=51 // pred_fallthru
          _
      $region52: #{conv_bn_forward.1} parent=5 // pred_fallthru
        _
    $region6: #{conv_bn_forward.1} parent=1 // loop_footer
      %s20 = sadd.s32 1, %s16
    $region7: #{conv_bn_forward.1} parent=1 // loop_footer_branch
      %15 = sbr.rel target = $region3
    $region8: #{conv_bn_forward.1} parent=1 // loop_exit
      _
    %661 = vsyncpa [#allocation3], 1
    %s662 = scalar_lea.sflag [#allocation3], 1
    %663 = vsyncpa %s662, 1
    %664 = vsyncpa [#allocation6], 1
    %665 = vsyncpa [#allocation4], 1
    %s666 = scalar_lea.sflag [#allocation4], 1
    %667 = vsyncpa %s666, 1

</llo_original>
